<compile_context>
chip_gen: v7x
topology: tpu7x:2x2x1
jax: 0.10.0
libtpu: 0.0.40
codegen_flags: <defaults>
</compile_context>

<pallas_src>
import functools

import jax
import jax.numpy as jnp
from jax.experimental import pallas as pl
from jax.experimental.pallas import tpu as pltpu


def _round_up(x, m):
    return ((x + m - 1) // m) * m


def _field_sampler_kernel(field_ref, gpack_ref, pos_ref, out_ref, *, mode, mm_dtype):
    G = field_ref.shape[1]

    field = field_ref[0]                 # [G, D]   field values (VMEM-resident per batch)
    grid = gpack_ref[0, 0:1, :]          # [1, G]   original sorted grid coordinates
    g_lo = gpack_ref[0, 1:2, :]          # [1, G]   [g0, g0..g_{G-2}]   (grid shifted right)
    g_cap = gpack_ref[0, 2:3, :]         # [1, G]   [g0..g_{G-2}, +inf]
    g_hi2 = gpack_ref[0, 3:4, :]         # [1, G]   [g1..g_{G-2}, +inf, +inf]
    pos = pos_ref[0]                     # [TN, 1]  query positions (sublane-major)

    grid_min = grid[:, 0:1]              # [1, 1]
    grid_max = grid[:, G - 1:G]          # [1, 1]
    pos_c = jnp.clip(pos, grid_min, grid_max)                    # [TN, 1]

    # one-hot at idx_right = min(searchsorted(grid, pos, right=True), G-1)
    onehot_r = (g_lo <= pos_c) & (g_cap > pos_c)                 # [TN, G] bool
    # one-hot at idx_left = idx_right - 1 (== clamp(count-1, 0, G-2))
    onehot_l = (g_cap <= pos_c) & (g_hi2 > pos_c)                # [TN, G] bool

    # gather the two bracketing grid coordinates (select + XLU lane-reduce; exact)
    g_left = jnp.sum(jnp.where(onehot_l, grid, 0.0), axis=1, keepdims=True)    # [TN, 1]
    g_right = jnp.sum(jnp.where(onehot_r, grid, 0.0), axis=1, keepdims=True)   # [TN, 1]

    if mode == 'nearest':
        use_left = jnp.abs(pos_c - g_left) <= jnp.abs(pos_c - g_right)         # [TN, 1]
        w_l = jnp.where(use_left, 1.0, 0.0)                                    # [TN, 1]
        w_r = 1.0 - w_l
    else:  # 'linear'
        denom = jnp.maximum(g_right - g_left, 1e-8)
        w_r = (pos_c - g_left) * pl.reciprocal(denom, approx=False)            # [TN, 1]
        w_l = 1.0 - w_r

    # Fused interpolation-weight matrix (exactly two nonzeros per row); the whole
    # gather + blend is a single MXU matmul.
    w = jnp.where(onehot_l, w_l, jnp.where(onehot_r, w_r, 0.0))                # [TN, G] f32

    f = field if field.dtype == mm_dtype else field.astype(mm_dtype)
    sampled = jnp.dot(w.astype(mm_dtype), f,
                      preferred_element_type=jnp.float32)                      # [TN, D]
    out_ref[0] = sampled.astype(out_ref.dtype)


def field_sampler(field, grid_points, sample_positions, mode='linear'):
    """Pallas equivalent of FieldSampler.forward.

    field:            [B, G, D]
    grid_points:      [B, G, P] with P == 1
    sample_positions: [B, N, P] with P == 1
    returns:          [B, N, D]
    """
    assert mode in ('nearest', 'linear')
    B, G, D = field.shape
    _, N, P = sample_positions.shape
    assert grid_points.shape == (B, G, P)
    assert P == 1, 'Only 1D sampling supported for now'
    assert G >= 2, 'Need at least two grid points for interpolation'

    f32 = jnp.float32
    grid_flat = grid_points[..., 0].astype(f32)                     # [B, G]
    inf_col = jnp.full((B, 1), jnp.inf, f32)
    g_lo = jnp.concatenate([grid_flat[:, :1], grid_flat[:, :G - 1]], axis=1)
    g_cap = jnp.concatenate([grid_flat[:, :G - 1], inf_col], axis=1)
    g_hi2 = jnp.concatenate([grid_flat[:, 1:G - 1], inf_col, inf_col], axis=1)
    grid_pack = jnp.stack([grid_flat, g_lo, g_cap, g_hi2], axis=1)  # [B, 4, G]

    itemsize = jnp.dtype(field.dtype).itemsize
    sublane = {4: 8, 2: 16, 1: 32}.get(itemsize, 8)

    # Generation-aware VMEM budget (v7x has 64 MiB/TC, v5e/v6e have 128 MiB).
    try:
        vmem_cap = int(pltpu.get_tpu_info().vmem_capacity_bytes)
    except Exception:
        vmem_cap = 128 * 1024 * 1024
    inter_cap = (8 << 20) if vmem_cap <= (64 << 20) else (16 << 20)

    # N tiling: fill MXU rows for large N, dtype-correct sublane multiple otherwise,
    # and cap TN so the ~6 live [TN, G] f32 intermediates stay within budget.
    if N > 128:
        TN = 512 if N >= 512 else (256 if N >= 256 else 128)
    else:
        TN = _round_up(N, sublane)
    max_tn = max(sublane, ((inter_cap // max(6 * 4 * G, 1)) // sublane) * sublane)
    TN = max(sublane, min(TN, max_tn))
    N_pad = _round_up(N, TN)

    pos_p = sample_positions.astype(f32)
    if N_pad != N:
        pos_p = jnp.pad(pos_p, ((0, 0), (0, N_pad - N), (0, 0)))

    # Only exact 0/1 nearest-mode weights use bf16 MXU operands; fractional linear
    # weights stay f32 for accuracy.
    mm_dtype = jnp.bfloat16 if (mode == 'nearest' and field.dtype == jnp.bfloat16) else f32

    # VMEM estimate: field (single-buffered) + grid pack + pos/out double buffers
    # + in-kernel [TN, G] intermediates.
    est = (G * D * itemsize + 4 * G * 4
           + 2 * TN * 4 + 2 * TN * D * itemsize
           + 8 * TN * G * 4)
    vmem_limit = int(min(max(2 * est, 32 << 20), int(0.6 * vmem_cap), 64 << 20))

    flops = 2 * B * N_pad * G * D + 12 * B * N_pad * G
    bytes_accessed = (B * G * D * itemsize + B * 4 * G * 4
                      + B * N_pad * 4 + B * N_pad * D * itemsize)
    cost = pl.CostEstimate(flops=flops, transcendentals=0,
                           bytes_accessed=bytes_accessed)

    kernel = functools.partial(_field_sampler_kernel, mode=mode, mm_dtype=mm_dtype)

    # TODO(synk): add a G-tiled / bucketed-searchsorted path for very large G, where
    # the O(TN*G) one-hot matmul becomes MXU-bound on all generations.
    out = pl.pallas_call(
        kernel,
        out_shape=jax.ShapeDtypeStruct((B, N_pad, D), field.dtype),
        grid=(B, N_pad // TN),
        in_specs=[
            # field / grid-pack index maps are constant over the N axis -> keep them
            # VMEM-resident with a single buffer (no wasted double buffer).
            pl.BlockSpec((1, G, D), lambda b, n: (b, 0, 0),
                         pipeline_mode=pl.Buffered(1)),
            pl.BlockSpec((1, 4, G), lambda b, n: (b, 0, 0),
                         pipeline_mode=pl.Buffered(1)),
            pl.BlockSpec((1, TN, 1), lambda b, n: (b, n, 0)),
        ],
        out_specs=pl.BlockSpec((1, TN, D), lambda b, n: (b, n, 0)),
        compiler_params=pltpu.CompilerParams(
            dimension_semantics=("parallel", "parallel"),
            vmem_limit_bytes=vmem_limit),
        cost_estimate=cost,
    )(field, grid_pack, pos_p)

    if N_pad != N:
        out = out[:, :N, :]
    return out


def _reference(field, grid_points, sample_positions, mode='linear'):
    # Pure-JAX reference mirroring the PyTorch forward.
    B, G, D = field.shape
    grid = grid_points[..., 0]            # [B, G]
    pos = sample_positions[..., 0]        # [B, N]

    def per_batch(f, g, p):
        p_c = jnp.clip(p, g[0], g[-1])
        idx_left = jnp.searchsorted(g, p_c, side='right') - 1
        idx_left = jnp.clip(idx_left, 0, G - 2)
        idx_right = idx_left + 1
        g_l = g[idx_left]
        g_r = g[idx_right]
        f_l = f[idx_left]
        f_r = f[idx_right]
        if mode == 'nearest':
            use_left = (jnp.abs(p_c - g_l) <= jnp.abs(p_c - g_r))[:, None]
            return jnp.where(use_left, f_l, f_r)
        denom = jnp.maximum(g_r - g_l, 1e-8)
        w_r = (p_c - g_l) / denom
        w_l = 1.0 - w_r
        return w_l[:, None] * f_l + w_r[:, None] * f_r

    return jax.vmap(per_batch)(field, grid, pos)


if __name__ == "__main__":
    B, G, D, N, P = 2, 16, 32, 8, 1

    key = jax.random.PRNGKey(0)
    k_field, k_grid, k_pos = jax.random.split(key, 3)

    field = jax.random.normal(k_field, (B, G, D), dtype=jnp.float32)
    # sorted (per batch) grid coordinates in roughly [0, 1]
    grid_points = jnp.sort(
        jax.random.uniform(k_grid, (B, G, P), dtype=jnp.float32), axis=1
    )
    # sample positions, intentionally a bit outside the grid range to exercise clamping
    sample_positions = jax.random.uniform(
        k_pos, (B, N, P), minval=-0.2, maxval=1.2, dtype=jnp.float32
    )

    out_linear = jax.block_until_ready(
        field_sampler(field, grid_points, sample_positions, mode='linear')
    )
    out_nearest = jax.block_until_ready(
        field_sampler(field, grid_points, sample_positions, mode='nearest')
    )

    ref_linear = _reference(field, grid_points, sample_positions, mode='linear')
    ref_nearest = _reference(field, grid_points, sample_positions, mode='nearest')

    assert out_linear.shape == (B, N, D)
    assert out_nearest.shape == (B, N, D)
    assert jnp.allclose(out_linear, ref_linear, atol=1e-5, rtol=1e-5)
    assert jnp.allclose(out_nearest, ref_nearest, atol=1e-5, rtol=1e-5)

    # Exercise the N-padding / slicing path (N not a sublane multiple).
    N2 = 13
    pos2 = jax.random.uniform(
        jax.random.PRNGKey(1), (B, N2, P), minval=-0.2, maxval=1.2, dtype=jnp.float32
    )
    out2 = jax.block_until_ready(
        field_sampler(field, grid_points, pos2, mode='linear')
    )
    ref2 = _reference(field, grid_points, pos2, mode='linear')
    assert out2.shape == (B, N2, D)
    assert jnp.allclose(out2, ref2, atol=1e-5, rtol=1e-5)

    print("KERNEL_OK")
</pallas_src>

<mosaic_0001>
module attributes {stable_mosaic.version = 11 : i64} {
  func.func @_field_sampler_kernel(%arg0: i32, %arg1: i32, %arg2: memref<1x16x32xf32, #tpu.memory_space<vmem>>, %arg3: memref<1x4x16xf32, #tpu.memory_space<vmem>>, %arg4: memref<1x8x1xf32, #tpu.memory_space<vmem>>, %arg5: memref<1x8x32xf32, #tpu.memory_space<vmem>>) attributes {dimension_semantics = [#tpu.dimension_semantics<parallel>, #tpu.dimension_semantics<parallel>], iteration_bounds = array<i64: 2, 1>, scalar_prefetch = 0 : i64, scratch_operands = 0 : i64, tpu.core_type = #tpu.core_type<tc>, window_params = [{pipeline_mode = #tpu.pipeline_mode<synchronous>, transform_indices = @transform_0, window_bounds = array<i64: 1, 16, 32>}, {pipeline_mode = #tpu.pipeline_mode<synchronous>, transform_indices = @transform_1, window_bounds = array<i64: 1, 4, 16>}, {transform_indices = @transform_2, window_bounds = array<i64: 1, 8, 1>}, {transform_indices = @transform_3, window_bounds = array<i64: 1, 8, 32>}]} {
    %c0 = arith.constant 0 : index
    %c0_0 = arith.constant 0 : index
    %c0_1 = arith.constant 0 : index
    %0 = vector.load %arg2[%c0, %c0_0, %c0_1] : memref<1x16x32xf32, #tpu.memory_space<vmem>>, vector<1x16x32xf32>
    %1 = vector.shape_cast %0 : vector<1x16x32xf32> to vector<16x32xf32>
    %c0_2 = arith.constant 0 : index
    %c0_3 = arith.constant 0 : index
    %c0_4 = arith.constant 0 : index
    %2 = vector.load %arg3[%c0_2, %c0_3, %c0_4] : memref<1x4x16xf32, #tpu.memory_space<vmem>>, vector<1x1x16xf32>
    %3 = vector.shape_cast %2 : vector<1x1x16xf32> to vector<1x16xf32>
    %c0_5 = arith.constant 0 : index
    %c1 = arith.constant 1 : index
    %c0_6 = arith.constant 0 : index
    %4 = vector.load %arg3[%c0_5, %c1, %c0_6] : memref<1x4x16xf32, #tpu.memory_space<vmem>>, vector<1x1x16xf32>
    %5 = vector.shape_cast %4 : vector<1x1x16xf32> to vector<1x16xf32>
    %c0_7 = arith.constant 0 : index
    %c2 = arith.constant 2 : index
    %c0_8 = arith.constant 0 : index
    %6 = vector.load %arg3[%c0_7, %c2, %c0_8] : memref<1x4x16xf32, #tpu.memory_space<vmem>>, vector<1x1x16xf32>
    %7 = vector.shape_cast %6 : vector<1x1x16xf32> to vector<1x16xf32>
    %c0_9 = arith.constant 0 : index
    %c3 = arith.constant 3 : index
    %c0_10 = arith.constant 0 : index
    %8 = vector.load %arg3[%c0_9, %c3, %c0_10] : memref<1x4x16xf32, #tpu.memory_space<vmem>>, vector<1x1x16xf32>
    %9 = vector.shape_cast %8 : vector<1x1x16xf32> to vector<1x16xf32>
    %c0_11 = arith.constant 0 : index
    %c0_12 = arith.constant 0 : index
    %c0_13 = arith.constant 0 : index
    %10 = vector.load %arg4[%c0_11, %c0_12, %c0_13] : memref<1x8x1xf32, #tpu.memory_space<vmem>>, vector<1x8x1xf32>
    %11 = vector.shape_cast %10 : vector<1x8x1xf32> to vector<8x1xf32>
    %12 = vector.extract_strided_slice %3 {offsets = [0, 0], sizes = [1, 1], strides = [1, 1]} : vector<1x16xf32> to vector<1x1xf32>
    %13 = vector.extract_strided_slice %3 {offsets = [0, 15], sizes = [1, 1], strides = [1, 1]} : vector<1x16xf32> to vector<1x1xf32>
    %14 = vector.broadcast %12 : vector<1x1xf32> to vector<8x1xf32>
    %15 = arith.maximumf %14, %11 : vector<8x1xf32>
    %16 = vector.broadcast %13 : vector<1x1xf32> to vector<8x1xf32>
    %17 = arith.minimumf %16, %15 : vector<8x1xf32>
    %18 = vector.broadcast %5 : vector<1x16xf32> to vector<8x16xf32>
    %19 = vector.broadcast %17 : vector<8x1xf32> to vector<8x16xf32>
    %20 = arith.cmpf ole, %18, %19 : vector<8x16xf32>
    %21 = vector.broadcast %7 : vector<1x16xf32> to vector<8x16xf32>
    %22 = vector.broadcast %17 : vector<8x1xf32> to vector<8x16xf32>
    %23 = arith.cmpf ogt, %21, %22 : vector<8x16xf32>
    %24 = arith.andi %20, %23 : vector<8x16xi1>
    %25 = vector.broadcast %7 : vector<1x16xf32> to vector<8x16xf32>
    %26 = vector.broadcast %17 : vector<8x1xf32> to vector<8x16xf32>
    %27 = arith.cmpf ole, %25, %26 : vector<8x16xf32>
    %28 = vector.broadcast %9 : vector<1x16xf32> to vector<8x16xf32>
    %29 = vector.broadcast %17 : vector<8x1xf32> to vector<8x16xf32>
    %30 = arith.cmpf ogt, %28, %29 : vector<8x16xf32>
    %31 = arith.andi %27, %30 : vector<8x16xi1>
    %cst = arith.constant 0.000000e+00 : f32
    %32 = vector.shape_cast %3 : vector<1x16xf32> to vector<1x16xf32>
    %33 = vector.broadcast %32 : vector<1x16xf32> to vector<8x16xf32>
    %34 = vector.broadcast %cst : f32 to vector<8x16xf32>
    %35 = arith.select %31, %33, %34 : vector<8x16xi1>, vector<8x16xf32>
    %cst_14 = arith.constant dense<0.000000e+00> : vector<8xf32>
    %36 = vector.multi_reduction <add>, %35, %cst_14 [1] : vector<8x16xf32> to vector<8xf32>
    %37 = vector.shape_cast %36 : vector<8xf32> to vector<8x1xf32>
    %cst_15 = arith.constant 0.000000e+00 : f32
    %38 = vector.shape_cast %3 : vector<1x16xf32> to vector<1x16xf32>
    %39 = vector.broadcast %38 : vector<1x16xf32> to vector<8x16xf32>
    %40 = vector.broadcast %cst_15 : f32 to vector<8x16xf32>
    %41 = arith.select %24, %39, %40 : vector<8x16xi1>, vector<8x16xf32>
    %cst_16 = arith.constant dense<0.000000e+00> : vector<8xf32>
    %42 = vector.multi_reduction <add>, %41, %cst_16 [1] : vector<8x16xf32> to vector<8xf32>
    %43 = vector.shape_cast %42 : vector<8xf32> to vector<8x1xf32>
    %44 = arith.subf %43, %37 : vector<8x1xf32>
    %cst_17 = arith.constant 9.99999993E-9 : f32
    %45 = vector.broadcast %cst_17 : f32 to vector<8x1xf32>
    %46 = arith.maximumf %44, %45 : vector<8x1xf32>
    %47 = arith.subf %17, %37 : vector<8x1xf32>
    %48 = tpu.reciprocal %46 : vector<8x1xf32> -> vector<8x1xf32>
    %49 = arith.mulf %47, %48 : vector<8x1xf32>
    %cst_18 = arith.constant 1.000000e+00 : f32
    %50 = vector.broadcast %cst_18 : f32 to vector<8x1xf32>
    %51 = arith.subf %50, %49 : vector<8x1xf32>
    %cst_19 = arith.constant 0.000000e+00 : f32
    %52 = vector.shape_cast %49 : vector<8x1xf32> to vector<8x1xf32>
    %53 = vector.broadcast %52 : vector<8x1xf32> to vector<8x16xf32>
    %54 = vector.broadcast %cst_19 : f32 to vector<8x16xf32>
    %55 = arith.select %24, %53, %54 : vector<8x16xi1>, vector<8x16xf32>
    %56 = vector.shape_cast %51 : vector<8x1xf32> to vector<8x1xf32>
    %57 = vector.broadcast %56 : vector<8x1xf32> to vector<8x16xf32>
    %58 = arith.select %31, %57, %55 : vector<8x16xi1>, vector<8x16xf32>
    %cst_20 = arith.constant dense<0.000000e+00> : vector<8x32xf32>
    %59 = tpu.matmul %58, %1, %cst_20 {dimension_numbers = #tpu.dot_dimension_numbers<[1], [0], [0], [1], [0, 0, 1, 1], [], []>} : vector<8x16xf32>, vector<16x32xf32>, vector<8x32xf32> -> vector<8x32xf32>
    %c0_21 = arith.constant 0 : index
    %c0_22 = arith.constant 0 : index
    %c0_23 = arith.constant 0 : index
    %60 = vector.load %arg5[%c0_21, %c0_22, %c0_23] : memref<1x8x32xf32, #tpu.memory_space<vmem>>, vector<1x8x32xf32>
    %61 = vector.shape_cast %60 : vector<1x8x32xf32> to vector<8x32xf32>
    %62 = vector.shape_cast %59 : vector<8x32xf32> to vector<1x8x32xf32>
    tpu.vector_store %arg5[%c0_21, %c0_22, %c0_23], %62 {strides = array<i32>} : memref<1x8x32xf32, #tpu.memory_space<vmem>>, vector<1x8x32xf32>,
    return
  }
  func.func @transform_0(%arg0: i32, %arg1: i32) -> (i32, i32, i32) {
    %c0_i32 = arith.constant 0 : i32
    %c0_i32_0 = arith.constant 0 : i32
    %c0_i32_1 = arith.constant 0 : i32
    return %arg0, %c0_i32, %c0_i32_0 : i32, i32, i32
  }
  func.func @transform_1(%arg0: i32, %arg1: i32) -> (i32, i32, i32) {
    %c0_i32 = arith.constant 0 : i32
    %c0_i32_0 = arith.constant 0 : i32
    %c0_i32_1 = arith.constant 0 : i32
    return %arg0, %c0_i32, %c0_i32_0 : i32, i32, i32
  }
  func.func @transform_2(%arg0: i32, %arg1: i32) -> (i32, i32, i32) {
    %c0_i32 = arith.constant 0 : i32
    %c0_i32_0 = arith.constant 0 : i32
    return %arg0, %arg1, %c0_i32 : i32, i32, i32
  }
  func.func @transform_3(%arg0: i32, %arg1: i32) -> (i32, i32, i32) {
    %c0_i32 = arith.constant 0 : i32
    %c0_i32_0 = arith.constant 0 : i32
    return %arg0, %arg1, %c0_i32 : i32, i32, i32
  }
}

</mosaic_0001>

<llo_original>
// kernel: tpu_custom_call.1
$region0: #{tpu_custom_call.1}
  #allocation0 [shape = 'u32[]', space=smem, size = 0x4, offset = 0x4, fixed_abs, tag = 'smem constant byte address 0x4 - core index']
  #allocation1 [shape = 'u32[144,128]{1,0:T(1,128)}', space=vmem, size = 0x12000, scoped, tag = 'internal scratch']
  %s0 = inlined_call_operand.hbm [shape: f32[2,16,32], index: 0, kind: input, shape index: {}]
  %s1 = inlined_call_operand.vmem [shape: f32[2,4,16], index: 1, kind: input, shape index: {}]
  %s2 = inlined_call_operand.vmem [shape: f32[2,8,1], index: 2, kind: input, shape index: {}]
  %s3 = inlined_call_operand.hbm [shape: f32[2,8,32], index: 3, kind: output, shape index: {}]
  %s4 = sld [smem:[#allocation0]]
  $region49: #{tpu_custom_call.1} parent=0
    _
  %s6 = ssub.s32 1, %s4
  %s7 = scalar_select 0, %s6, %s4
  $region1: #{tpu_custom_call.1} parent=0
    #allocation2 [shape = 'u8[8192]{0}', space=vmem, size = 0x2000, scoped, tag = 'input window, operand 0, single buffered']
    #allocation3 [shape = 's32[2]{0}', space=sflag, size = 0x8, scoped, tag = 'scoped memory for tpu_custom_call.1']
    #allocation4 [shape = 's32[2]{0}', space=sflag, size = 0x8, scoped, tag = 'scoped memory for tpu_custom_call.1']
    #allocation5 [shape = 'u8[8192]{0}', space=vmem, size = 0x2000, scoped, tag = 'output window, operand 0']
    %8 = vsyncpa [#allocation3], 0
    %9 = vsyncpa [#allocation4], 0
    %s10 = scalar_lea.sflag [#allocation4], 1
    %11 = vsyncpa %s10, 0
    loop: start=0, step=1, limit=4
    $region2: #{tpu_custom_call.1} parent=1 // loop_pre_header
      _
    $region3: #{tpu_custom_call.1} parent=1 // loop_header
      %s13 = sphi 0, %s17
      %p14 = scmp.ge.s32.totalorder %s13, 4
      %s20 = sphi 0, %s32
      %s21 = sphi 0, %s28
      %s22 = sphi 0, %s20
      %s23 = sphi 0, %s21
      %s24 = sphi 0, %s22
      %s25 = sphi 0, %s23
      %s35 = sphi 0, %s37
      %s38 = sphi 0, %s35
      %s39 = sphi 0, %s38
      %s55 = sphi 0, %s39
      %s61 = sphi 0, %s63
      %s64 = sphi 0, %s61
      %s65 = sphi 0, %s64
      %s81 = sphi 0, %s65
      %s89 = sphi 0, %s91
      %s92 = sphi 0, %s89
      %s93 = sphi 0, %s92
      %s109 = sphi 0, %s93
      %s117 = sphi 0, %s119
      %s120 = sphi 0, %s117
      %s121 = sphi 0, %s120
      %s137 = sphi 0, %s121
    $region4: #{tpu_custom_call.1} parent=1 // loop_header_branch
      %16 = sbr.rel (%p14) target = $region8
    $region5: #{tpu_custom_call.1} parent=1 // loop_body
      %s18 = ssub.s32 %s13, 1
      %s19 = ssub.s32 %s13, 2
      %s26 = sadd.s32 1, %s21
      %p27 = scmp.ge.s32.totalorder %s26, 1
      %s28 = scalar_select %p27, 0, %s26
      %s29 = sadd.s32 1, %s20
      %s30 = scalar_select %p27, %s29, %s20
      %p31 = scmp.ge.s32.totalorder %s30, 2
      %s32 = scalar_select %p31, 0, %s30
      %s33 = ssub.s32 %s20, %s32
      %p34 = scmp.eq.s32.totalorder %s33, 0
      %s36 = sadd.s32 %s35, 1
      %s37 = scalar_select %p34, %s35, %s36
      %p40 = pneg %p34
      %p41 = scmp.eq.s32.totalorder %s13, 1
      %p42 = por %p40, %p41
      %p43 = scmp.ne.s32.totalorder %s35, %s38
      %p44 = scmp.eq.s32.totalorder %s13, 0
      %p45 = por %p43, %p44
      %p46 = scmp.ne.s32.totalorder %s35, %s38
      %p47 = scmp.eq.s32.totalorder %s18, 1
      %p48 = por %p46, %p47
      %p49 = scmp.ne.s32.totalorder %s38, %s39
      %p50 = scmp.eq.s32.totalorder %s18, 0
      %p51 = por %p49, %p50
      %p52 = scmp.ne.s32.totalorder %s38, %s39
      %p53 = scmp.eq.s32.totalorder %s19, 1
      %p54 = por %p52, %p53
      %p56 = scmp.ne.s32.totalorder %s39, %s55
      %p57 = scmp.eq.s32.totalorder %s19, 0
      %p58 = por %p56, %p57
      %s59 = ssub.s32 %s20, %s32
      %p60 = scmp.eq.s32.totalorder %s59, 0
      %s62 = sadd.s32 %s61, 1
      %s63 = scalar_select %p60, %s61, %s62
      %p66 = pneg %p60
      %p67 = scmp.eq.s32.totalorder %s13, 1
      %p68 = por %p66, %p67
      %p69 = scmp.ne.s32.totalorder %s61, %s64
      %p70 = scmp.eq.s32.totalorder %s13, 0
      %p71 = por %p69, %p70
      %p72 = scmp.ne.s32.totalorder %s61, %s64
      %p73 = scmp.eq.s32.totalorder %s18, 1
      %p74 = por %p72, %p73
      %p75 = scmp.ne.s32.totalorder %s64, %s65
      %p76 = scmp.eq.s32.totalorder %s18, 0
      %p77 = por %p75, %p76
      %p78 = scmp.ne.s32.totalorder %s64, %s65
      %p79 = scmp.eq.s32.totalorder %s19, 1
      %p80 = por %p78, %p79
      %p82 = scmp.ne.s32.totalorder %s65, %s81
      %p83 = scmp.eq.s32.totalorder %s19, 0
      %p84 = por %p82, %p83
      %s85 = ssub.s32 %s20, %s32
      %s86 = ssub.s32 %s21, %s28
      %s87 = sor.u32 %s85, %s86
      %p88 = scmp.eq.s32.totalorder %s87, 0
      %s90 = sadd.s32 %s89, 1
      %s91 = scalar_select %p88, %s89, %s90
      %p94 = pneg %p88
      %p95 = scmp.eq.s32.totalorder %s13, 1
      %p96 = por %p94, %p95
      %p97 = scmp.ne.s32.totalorder %s89, %s92
      %p98 = scmp.eq.s32.totalorder %s13, 0
      %p99 = por %p97, %p98
      %p100 = scmp.ne.s32.totalorder %s89, %s92
      %p101 = scmp.eq.s32.totalorder %s18, 1
      %p102 = por %p100, %p101
      %p103 = scmp.ne.s32.totalorder %s92, %s93
      %p104 = scmp.eq.s32.totalorder %s18, 0
      %p105 = por %p103, %p104
      %p106 = scmp.ne.s32.totalorder %s92, %s93
      %p107 = scmp.eq.s32.totalorder %s19, 1
      %p108 = por %p106, %p107
      %p110 = scmp.ne.s32.totalorder %s93, %s109
      %p111 = scmp.eq.s32.totalorder %s19, 0
      %p112 = por %p110, %p111
      %s113 = ssub.s32 %s20, %s32
      %s114 = ssub.s32 %s21, %s28
      %s115 = sor.u32 %s113, %s114
      %p116 = scmp.eq.s32.totalorder %s115, 0
      %s118 = sadd.s32 %s117, 1
      %s119 = scalar_select %p116, %s117, %s118
      %p122 = pneg %p116
      %p123 = scmp.eq.s32.totalorder %s13, 1
      %p124 = por %p122, %p123
      %p125 = scmp.ne.s32.totalorder %s117, %s120
      %p126 = scmp.eq.s32.totalorder %s13, 0
      %p127 = por %p125, %p126
      %p128 = scmp.ne.s32.totalorder %s117, %s120
      %p129 = scmp.eq.s32.totalorder %s18, 1
      %p130 = por %p128, %p129
      %p131 = scmp.ne.s32.totalorder %s120, %s121
      %p132 = scmp.eq.s32.totalorder %s18, 0
      %p133 = por %p131, %p132
      %p134 = scmp.ne.s32.totalorder %s120, %s121
      %p135 = scmp.eq.s32.totalorder %s19, 1
      %p136 = por %p134, %p135
      %p138 = scmp.ne.s32.totalorder %s121, %s137
      %p139 = scmp.eq.s32.totalorder %s19, 0
      %p140 = por %p138, %p139
      %p141 = scmp.le.s32.totalorder 1, %s13
      %p142 = scmp.lt.s32.totalorder %s13, 3
      %p143 = pnand %p141, %p142
      %p144 = pneg %p143
      // Predicated region
      $region9: #{tpu_custom_call.1} parent=5 // pred_check
        _
      $region10: #{tpu_custom_call.1} parent=5 // pred_check_branch
        %146 = sbr.rel (%p143) target = $region12
      $region11: #{tpu_custom_call.1} parent=5 // pred_region
        %s147 = ssub.s32 %s13, 1
        // Predicated region
        $region13: #{tpu_custom_call.1} parent=11 // pred_check
          %p148 = pneg %p51
        $region14: #{tpu_custom_call.1} parent=11 // pred_check_branch
          %150 = sbr.rel (%p148) target = $region16
        $region15: #{tpu_custom_call.1} parent=11 // pred_region
          %s152 = ssub.s32 256, 256
          %153 = vsyncadd [#allocation3], %s152
          %s154 = smul.addr %s22, 2
          %s155 = smul.addr %s154, 128
          %s156 = scalar_lea.hbm %s0, %s155
          %s157 = sshll.u32 [#allocation2], 4
          %s158 = int_to_ptr.vmem [resolvable:$true] %s157
          %163 = dma.hbm_to_vmem [thread:$0]  %s156, 256, %s158, [#allocation3], 128, 128, 8
        $region16: #{tpu_custom_call.1} parent=11 // pred_fallthru
          _
        // Predicated region
        $region17: #{tpu_custom_call.1} parent=11 // pred_check
          %p164 = pneg %p77
        $region18: #{tpu_custom_call.1} parent=11 // pred_check_branch
          %166 = sbr.rel (%p164) target = $region20
        $region19: #{tpu_custom_call.1} parent=11 // pred_region
          %p167 = scmp.lt.s32.totalorder %s22, 1
          %s168 = scalar_select %p167, %s22, 1
          %s169 = smul.addr %s168, 4
          %s170 = scalar_lea.vmem %s1, %s169
        $region20: #{tpu_custom_call.1} parent=11 // pred_fallthru
          _
      $region12: #{tpu_custom_call.1} parent=5 // pred_fallthru
        _
      %p171 = scmp.lt.s32.totalorder %s13, 2
      // Predicated region
      $region21: #{tpu_custom_call.1} parent=5 // pred_check
        %p172 = pneg %p171
      $region22: #{tpu_custom_call.1} parent=5 // pred_check_branch
        %174 = sbr.rel (%p172) target = $region24
      $region23: #{tpu_custom_call.1} parent=5 // pred_region
        // Predicated region
        $region25: #{tpu_custom_call.1} parent=23 // pred_check
          %p175 = pneg %p99
        $region26: #{tpu_custom_call.1} parent=23 // pred_check_branch
          %177 = sbr.rel (%p175) target = $region28
        $region27: #{tpu_custom_call.1} parent=23 // pred_region
          %p178 = scmp.lt.s32.totalorder %s20, 1
          %s179 = scalar_select %p178, %s20, 1
          %p180 = scmp.lt.s32.totalorder %s21, 0
          %s181 = scalar_select %p180, %s21, 0
          %s182 = sadd.s32 %s181, %s179
          %s183 = smul.addr %s182, 8
          %s184 = scalar_lea.vmem %s2, %s183
        $region28: #{tpu_custom_call.1} parent=23 // pred_fallthru
          _
      $region24: #{tpu_custom_call.1} parent=5 // pred_fallthru
        _
      %p185 = scmp.le.s32.totalorder 1, %s13
      %p186 = scmp.lt.s32.totalorder %s13, 3
      %p187 = pnand %p185, %p186
      %p188 = pneg %p187
      // Predicated region
      $region29: #{tpu_custom_call.1} parent=5 // pred_check
        _
      $region30: #{tpu_custom_call.1} parent=5 // pred_check_branch
        %190 = sbr.rel (%p187) target = $region32
      $region31: #{tpu_custom_call.1} parent=5 // pred_region
        %s191 = ssub.s32 %s13, 1
        // Predicated region
        $region33: #{tpu_custom_call.1} parent=31 // pred_check
          %p192 = pneg %p51
        $region34: #{tpu_custom_call.1} parent=31 // pred_check_branch
          %194 = sbr.rel (%p192) target = $region36
        $region35: #{tpu_custom_call.1} parent=31 // pred_region
          %195 = dma.done [#allocation3], 256
        $region36: #{tpu_custom_call.1} parent=31 // pred_fallthru
          _
        %p196 = pneg %p51
        %p197 = pneg %p48
        %p198 = scmp.lt.s32.totalorder %s22, 1
        %s199 = scalar_select %p198, %s22, 1
        %s200 = smul.addr %s199, 4
        %s201 = scalar_lea.vmem %s1, %s200
        %p202 = pneg %p77
        %p203 = pneg %p74
        %p204 = scmp.lt.s32.totalorder %s22, 1
        %s205 = scalar_select %p204, %s22, 1
        %p206 = scmp.lt.s32.totalorder %s23, 0
        %s207 = scalar_select %p206, %s23, 0
        %s208 = sadd.s32 %s207, %s205
        %s209 = smul.addr %s208, 8
        %s210 = scalar_lea.vmem %s2, %s209
        %p211 = pneg %p105
        %p212 = pneg %p102
        %p213 = pneg %p133
        %p214 = pneg %p130
        %s215 = sand.u32 %s120, 1
        %s216 = scalar_lea.sflag [#allocation4], %s215
        %s217 = sand.u32 %s120, 1
        %s218 = smul.addr %s217, 8
        %s219 = scalar_lea.vmem [#allocation5], %s218
        %p220 = scmp.lt.s32.totalorder %s22, 1
        %s221 = scalar_select %p220, %s22, 1
        %s222 = smul.addr %s221, 4
        %s223 = scalar_lea.vmem %s1, %s222
        %p224 = scmp.lt.s32.totalorder %s22, 1
        %s225 = scalar_select %p224, %s22, 1
        %p226 = scmp.lt.s32.totalorder %s23, 0
        %s227 = scalar_select %p226, %s23, 0
        %s228 = sadd.s32 %s227, %s225
        %s229 = smul.addr %s228, 8
        %s230 = scalar_lea.vmem %s2, %s229
        %v231 = vld [vmem:[#allocation2] sm:$0xff]
        %v232 = vld [vmem:[#allocation2 + $0x8] sm:$0xff]
        %v233 = vld [vmem:[%s223] sm:$0x1]
        %v234 = vld [vmem:[%s223 + $0x1] sm:$0x1]
        %v235 = vld [vmem:[%s223 + $0x2] sm:$0x1]
        %v236 = vld [vmem:[%s223 + $0x3] sm:$0x1]
        %v237 = vld [vmem:[%s230] sm:$0xff]
        %v238 = vlaneseq
        %v239 = vshrl.u32 %v238, 7
        %v240 = vsub.s32 0, %v239
        %v241 = vrot.slane %v233, %v240
        %v242 = vmax.f32 %v241, %v237
        %244 = vrot.lane.b32.xlu0 %v242, 15
        %v245 = vpop.permute.xlu0 %244
        %v247 = vmin.f32 %v241, %v245
        %v248 = vlaneseq
        %v249 = vshrl.u32 %v248, 7
        %v250 = vsub.s32 0, %v249
        %v251 = vrot.slane %v234, %v250
        %253 = vset.pattern.permute.xlu0 15
        %254 = vperm.xlu0 %253, %v247
        %v255 = vpop.permute.xlu0 %254
        %vm257 = vcmp.le.f32.partialorder %v251, %v255
        %v258 = vlaneseq
        %v259 = vshrl.u32 %v258, 7
        %v260 = vsub.s32 0, %v259
        %v261 = vrot.slane %v235, %v260
        %vm262 = vcmp.gt.f32.partialorder %v261, %v255
        %vm263 = vmand %vm257, %vm262
        %vm264 = vcmp.le.f32.partialorder %v261, %v255
        %v265 = vlaneseq
        %v266 = vshrl.u32 %v265, 7
        %v267 = vsub.s32 0, %v266
        %v268 = vrot.slane %v236, %v267
        %vm269 = vcmp.gt.f32.partialorder %v268, %v255
        %vm270 = vmand %vm264, %vm269
        %v271 = vsel %vm270, %v241, 0.0
        %vm272 = vcmask 130048
        %v273 = vsel %vm272, %v271, 0.0
        %274 = vadd.xlane.f32.xlu0 %v273
        %v275 = vpop.xlane.xlu0 %274
        %v276 = vsel %vm263, %v241, 0.0
        %v277 = vsel %vm272, %v276, 0.0
        %278 = vadd.xlane.f32.xlu0 %v277
        %v279 = vpop.xlane.xlu0 %278
        %v280 = vsub.f32 %v279, %v275
        %v281 = vmax.f32 %v280, 1e-08
        %v282 = vsub.f32 %v247, %v275
        %v283 = vrcp.pop %v281
        %v284 = vmul.f32 %v282, %v283
        %v285 = vsub.f32 1.0, %v284
        %287 = vset.pattern.permute.xlu0 15
        %288 = vperm.xlu0 %287, %v284
        %v289 = vpop.permute.xlu0 %288
        %v291 = vsel %vm263, %v289, 0.0
        %293 = vset.pattern.permute.xlu0 15
        %294 = vperm.xlu0 %293, %v285
        %v295 = vpop.permute.xlu0 %294
        %v297 = vsel %vm270, %v295, %v291
        %v299 = vsel %vm272, %v297, 0
        %301 = vmatprep.subr.mxu0 0.0
        %302 = vmatpush1.msra.mxu0 %v231
        %303 = vmatprep.subr.mxu0 0.0
        %304 = vmatpush1.msra.mxu0 %v232
        %305 = vmatprep.subr.mxu0 0.0
        %306 = vmatpush1.msra.mxu0 0.0
        %307 = vmatprep.subr.mxu0 0.0
        %308 = vmatpush1.msra.mxu0 0.0
        %309 = vmatprep.subr.mxu0 0.0
        %310 = vmatpush1.msra.mxu0 0.0
        %311 = vmatprep.subr.mxu0 0.0
        %312 = vmatpush1.msra.mxu0 0.0
        %313 = vmatprep.subr.mxu0 0.0
        %314 = vmatpush1.msra.mxu0 0.0
        %315 = vmatprep.subr.mxu0 0.0
        %316 = vmatpush1.msra.mxu0 0.0
        %317 = vmatprep.subr.mxu0 0.0
        %318 = vmatpush1.msra.mxu0 0.0
        %319 = vmatprep.subr.mxu0 0.0
        %320 = vmatpush1.msra.mxu0 0.0
        %321 = vmatprep.subr.mxu0 0.0
        %322 = vmatpush1.msra.mxu0 0.0
        %323 = vmatprep.subr.mxu0 0.0
        %324 = vmatpush1.msra.mxu0 0.0
        %325 = vmatprep.subr.mxu0 0.0
        %326 = vmatpush1.msra.mxu0 0.0
        %327 = vmatprep.subr.mxu0 0.0
        %328 = vmatpush1.msra.mxu0 0.0
        %329 = vmatprep.subr.mxu0 0.0
        %330 = vmatpush1.msra.mxu0 0.0
        %331 = vmatprep.subr.mxu0 0.0
        %332 = vmatpush1.msra.mxu0 0.0
        %333 = vmatprep.subr.mxu0 0.0
        %334 = vmatpush1.msra.mxu0 0.0
        %335 = vmatprep.subr.mxu0 0.0
        %336 = vmatpush1.msra.mxu0 0.0
        %337 = vmatprep.subr.mxu0 0.0
        %338 = vmatpush1.msra.mxu0 0.0
        %339 = vmatprep.subr.mxu0 0.0
        %340 = vmatpush1.msra.mxu0 0.0
        %341 = vmatprep.subr.mxu0 0.0
        %342 = vmatpush1.msra.mxu0 0.0
        %343 = vmatprep.subr.mxu0 0.0
        %344 = vmatpush1.msra.mxu0 0.0
        %345 = vmatprep.subr.mxu0 0.0
        %346 = vmatpush1.msra.mxu0 0.0
        %347 = vmatprep.subr.mxu0 0.0
        %348 = vmatpush1.msra.mxu0 0.0
        %349 = vmatprep.subr.mxu0 0.0
        %350 = vmatpush1.msra.mxu0 0.0
        %351 = vmatprep.subr.mxu0 0.0
        %352 = vmatpush1.msra.mxu0 0.0
        %353 = vmatprep.subr.mxu0 0.0
        %354 = vmatpush1.msra.mxu0 0.0
        %355 = vmatprep.subr.mxu0 0.0
        %356 = vmatpush1.msra.mxu0 0.0
        %357 = vmatprep.subr.mxu0 0.0
        %358 = vmatpush1.msra.mxu0 0.0
        %359 = vmatprep.subr.mxu0 0.0
        %360 = vmatpush1.msra.mxu0 0.0
        %361 = vmatprep.subr.mxu0 0.0
        %362 = vmatpush1.msra.mxu0 0.0
        %363 = vmatprep.subr.mxu0 0.0
        %364 = vmatpush1.msra.mxu0 0.0
        %365 = vmatprep.mubr.f32.mxu0 0.0
        %366 = vmatmul.mubr.f32.gmra.mrb[0].mxu0 %v299
        %v367 = vpop.f32.mrb[0].mxu0
        %v368 = vadd.f32 0.0, %v367
        %v369 = vpop.f32.mrb[0].mxu0
        %370 = vdwg.mxu0
        %vm371 = vcmask 261120
        %372 = vst.msk [vmem:[%s219] sm:$0xff] %vm371, %v368
        %s373 = sand.u32 %s120, 1
        %s374 = scalar_lea.sflag [#allocation4], %s373
        %s375 = sand.u32 %s120, 1
        %s376 = smul.addr %s375, 8
        %s377 = scalar_lea.vmem [#allocation5], %s376
        // Predicated region
        $region37: #{tpu_custom_call.1} parent=31 // pred_check
          %p378 = pneg %p130
        $region38: #{tpu_custom_call.1} parent=31 // pred_check_branch
          %380 = sbr.rel (%p378) target = $region40
        $region39: #{tpu_custom_call.1} parent=31 // pred_region
          %s382 = ssub.s32 128, 128
          %383 = vsyncadd %s374, %s382
          %s384 = sadd.s32 %s23, %s22
          %s385 = smul.addr %s384, 128
          %s386 = scalar_lea.hbm %s3, %s385
          %s388 = sshll.u32 %s377, 4
          %s389 = int_to_ptr.vmem [resolvable:$true] %s388
          %391 = dma.vmem_to_hbm [thread:$0]  %s389, 128, %s386, %s374
        $region40: #{tpu_custom_call.1} parent=31 // pred_fallthru
          _
      $region32: #{tpu_custom_call.1} parent=5 // pred_fallthru
        _
      %p392 = scmp.le.s32.totalorder 2, %s13
      // Predicated region
      $region41: #{tpu_custom_call.1} parent=5 // pred_check
        %p393 = pneg %p392
      $region42: #{tpu_custom_call.1} parent=5 // pred_check_branch
        %395 = sbr.rel (%p393) target = $region44
      $region43: #{tpu_custom_call.1} parent=5 // pred_region
        %s396 = ssub.s32 %s13, 2
        // Predicated region
        $region45: #{tpu_custom_call.1} parent=43 // pred_check
          %p397 = pneg %p136
        $region46: #{tpu_custom_call.1} parent=43 // pred_check_branch
          %399 = sbr.rel (%p397) target = $region48
        $region47: #{tpu_custom_call.1} parent=43 // pred_region
          %s400 = sand.u32 %s121, 1
          %s401 = scalar_lea.sflag [#allocation4], %s400
          %s402 = sand.u32 %s121, 1
          %s403 = smul.addr %s402, 8
          %s404 = scalar_lea.vmem [#allocation5], %s403
          %405 = dma.done %s401, 128
        $region48: #{tpu_custom_call.1} parent=43 // pred_fallthru
          _
      $region44: #{tpu_custom_call.1} parent=5 // pred_fallthru
        _
    $region6: #{tpu_custom_call.1} parent=1 // loop_footer
      %s17 = sadd.s32 1, %s13
    $region7: #{tpu_custom_call.1} parent=1 // loop_footer_branch
      %12 = sbr.rel target = $region3
    $region8: #{tpu_custom_call.1} parent=1 // loop_exit
      _
    %406 = vsyncpa [#allocation3], 1
    %s407 = scalar_lea.sflag [#allocation3], 1
    %408 = vsyncpa %s407, 1
    %409 = vsyncpa [#allocation4], 1
    %s410 = scalar_lea.sflag [#allocation4], 1
    %411 = vsyncpa %s410, 1

</llo_original>
